<compile_context>
chip_gen: v7x
topology: tpu7x:2x2x1
jax: 0.10.0
libtpu: 0.0.40
codegen_flags: <defaults>
</compile_context>

<pallas_src>
import functools

import jax
import jax.numpy as jnp
from jax import lax
from jax.experimental import pallas as pl
from jax.experimental.pallas import tpu as pltpu

LANES = 128
TARGET_TILE_BYTES = 4 << 20      # ~4 MiB per input tile per grid step
CHUNK_ROWS = 64                  # rows consumed per inner accumulation step
VMEM_LIMIT_BYTES = 32 << 20      # explicit: v5e default (16 MiB) is too small


def _round_up(x, m):
    return (x + m - 1) // m * m


def _fold_to_sublanes(x):
    """(r, 128) f32 -> (8, 128) partial sums via pure VPU vreg adds."""
    r = x.shape[0]
    rem = r % 8
    if rem:
        x = jnp.concatenate([x, jnp.zeros((8 - rem, LANES), x.dtype)], axis=0)
        r += 8 - rem
    return jnp.sum(x.reshape(r // 8, 8, LANES), axis=0)


def _dice_partial_kernel(s_ref, t_ref, out_ref, *, rows, row_block, num_inner,
                         any_overhang):
    o = pl.program_id(0)
    j = pl.program_id(1)

    # Output block is resident across the inner ("arbitrary") axis: zero it on
    # the first inner step, accumulate into it on every step.
    @pl.when(j == 0)
    def _():
        out_ref[...] = jnp.zeros_like(out_ref)

    gidx = o * num_inner + j            # logical (unclamped) block index
    block_start = gidx * row_block      # logical first row of this block

    def chunk_partial(c_start, c_rows, masked):
        s = s_ref[pl.ds(c_start, c_rows), :].astype(jnp.float32)
        t = t_ref[pl.ds(c_start, c_rows), :].astype(jnp.float32)
        if masked:
            ridx = block_start + c_start + lax.broadcasted_iota(
                jnp.int32, (c_rows, LANES), 0)
            valid = ridx < rows
            zero = jnp.zeros_like(s)
            s = jnp.where(valid, s, zero)
            t = jnp.where(valid, t, zero)
        return (_fold_to_sublanes(s * t),    # intersect partial
                _fold_to_sublanes(t * t),    # y_sum partial
                _fold_to_sublanes(s * s))    # z_sum partial

    def accumulate(masked):
        zeros = jnp.zeros((8, LANES), jnp.float32)
        accs = (zeros, zeros, zeros)

        n_chunks = row_block // CHUNK_ROWS
        rem_rows = row_block - n_chunks * CHUNK_ROWS

        if n_chunks:
            def body(c, carry):
                ai, ay, az = carry
                start = pl.multiple_of(c * CHUNK_ROWS, CHUNK_ROWS)
                pi, py, pz = chunk_partial(start, CHUNK_ROWS, masked)
                return (ai + pi, ay + py, az + pz)
            accs = lax.fori_loop(0, n_chunks, body, accs)

        if rem_rows:
            pi, py, pz = chunk_partial(n_chunks * CHUNK_ROWS, rem_rows, masked)
            accs = (accs[0] + pi, accs[1] + py, accs[2] + pz)

        ai, ay, az = accs
        out_ref[0, 0] += ai
        out_ref[0, 1] += ay
        out_ref[0, 2] += az

    if not any_overhang:
        accumulate(False)
    else:
        # Only overhanging blocks (ragged tail / rare dead trailing block) pay
        # for the iota + selects; all interior blocks take the unmasked path.
        overhang = (block_start + row_block) > rows
        pl.when(jnp.logical_not(overhang))(lambda: accumulate(False))
        pl.when(overhang)(lambda: accumulate(True))


def binary_dice_loss(inputs, target):
    assert inputs.shape == target.shape, "predict & target shape do not match"

    n = inputs.size

    # Lane-dense flatten.  When n is a multiple of 128 this is a pure metadata
    # reshape of the contiguous array (no extra HBM traffic, native dtype).
    if n % LANES == 0:
        rows = n // LANES
        s2d = inputs.reshape(rows, LANES)
        t2d = target.reshape(rows, LANES)
    else:
        # A (rows, 128) lane-dense view fundamentally requires n % 128 == 0;
        # for awkward sizes pay one zero-pad pass (zeros don't perturb sums).
        # TODO(synk): zero-copy awkward-n path would need a 1-D-block kernel
        # with a flat (row*128 + lane < n) mask.
        pad = _round_up(n, LANES) - n
        rows = (n + pad) // LANES
        s2d = jnp.pad(inputs.reshape(-1), (0, pad)).reshape(rows, LANES)
        t2d = jnp.pad(target.reshape(-1), (0, pad)).reshape(rows, LANES)

    itemsize = max(jnp.dtype(inputs.dtype).itemsize,
                   jnp.dtype(target.dtype).itemsize)
    # Dtype-scaled tile: ~4 MiB per input per grid step (8192 rows for f32).
    max_rows = max(8, TARGET_TILE_BYTES // (LANES * itemsize))
    row_block = rows if rows <= max_rows else max_rows      # full-extent block
    blocks_needed = pl.cdiv(rows, row_block)                 # if rows is small

    # Leading "parallel" axis of size 2 keeps the v7x megacore split; the inner
    # "arbitrary" axis accumulates into a resident output block.
    num_outer = 2 if blocks_needed >= 2 else 1
    num_inner = pl.cdiv(blocks_needed, num_outer)
    any_overhang = (rows % row_block != 0) or (num_outer * num_inner != blocks_needed)

    if num_outer * num_inner == blocks_needed:
        def row_map(o, j):
            return (o * num_inner + j, 0)
    else:
        def row_map(o, j):
            # Rare dead trailing block: clamp so it never indexes past the
            # array; its contribution is zeroed by the in-kernel mask.
            return (jnp.minimum(o * num_inner + j, blocks_needed - 1), 0)

    kernel = functools.partial(
        _dice_partial_kernel,
        rows=rows,
        row_block=row_block,
        num_inner=num_inner,
        any_overhang=any_overhang,
    )

    partials = pl.pallas_call(
        kernel,
        out_shape=jax.ShapeDtypeStruct((num_outer, 3, 8, LANES), jnp.float32),
        grid_spec=pltpu.PrefetchScalarGridSpec(
            num_scalar_prefetch=0,
            grid=(num_outer, num_inner),
            in_specs=[
                pl.BlockSpec((row_block, LANES), row_map),
                pl.BlockSpec((row_block, LANES), row_map),
            ],
            out_specs=pl.BlockSpec((1, 3, 8, LANES), lambda o, j: (o, 0, 0, 0)),
        ),
        compiler_params=pltpu.CompilerParams(
            dimension_semantics=("parallel", "arbitrary"),
            vmem_limit_bytes=VMEM_LIMIT_BYTES,
        ),
        cost_estimate=pl.CostEstimate(
            flops=5 * rows * LANES,
            transcendentals=0,
            bytes_accessed=2 * rows * LANES * itemsize
                           + num_outer * 3 * 8 * LANES * 4,
        ),
    )(s2d, t2d)

    # Tiny epilogue reduce over (num_outer, 3, 8, 128) partials.
    sums = jnp.sum(partials, axis=(0, 2, 3))  # (3,)
    intersect, y_sum, z_sum = sums[0], sums[1], sums[2]
    smooth = jnp.float32(1e-06)
    dice = (2.0 * intersect + smooth) / (z_sum + y_sum + smooth)
    return (1.0 - dice).astype(jnp.float32)


def binary_dice_loss_ref(inputs, target):
    smooth = 1e-06
    s = inputs.astype(jnp.float32)
    t = target.astype(jnp.float32)
    intersect = jnp.sum(s * t)
    y_sum = jnp.sum(t * t)
    z_sum = jnp.sum(s * s)
    dice = (2.0 * intersect + smooth) / (z_sum + y_sum + smooth)
    return 1.0 - dice


if __name__ == "__main__":
    key = jax.random.PRNGKey(0)
    k1, k2 = jax.random.split(key)

    # NCHW, matching the PyTorch module's expected input layout.
    shape = (2, 4, 16, 16)
    inputs = jax.nn.sigmoid(jax.random.normal(k1, shape, dtype=jnp.float32))
    target = (jax.random.uniform(k2, shape) > 0.5).astype(jnp.float32)

    loss = jax.block_until_ready(binary_dice_loss(inputs, target))
    ref = jax.block_until_ready(binary_dice_loss_ref(inputs, target))

    assert jnp.allclose(loss, ref, rtol=1e-5, atol=1e-6), (loss, ref)
    print("KERNEL_OK")
</pallas_src>

<mosaic_0001>
module attributes {stable_mosaic.version = 11 : i64} {
  func.func @_dice_partial_kernel(%arg0: i32, %arg1: i32, %arg2: memref<16x128xf32, #tpu.memory_space<vmem>>, %arg3: memref<16x128xf32, #tpu.memory_space<vmem>>, %arg4: memref<1x3x8x128xf32, #tpu.memory_space<vmem>>) attributes {dimension_semantics = [#tpu.dimension_semantics<parallel>, #tpu.dimension_semantics<arbitrary>], iteration_bounds = array<i64: 1, 1>, scalar_prefetch = 0 : i64, scratch_operands = 0 : i64, tpu.core_type = #tpu.core_type<tc>, window_params = [{transform_indices = @transform_0, window_bounds = array<i64: 16, 128>}, {transform_indices = @transform_1, window_bounds = array<i64: 16, 128>}, {transform_indices = @transform_2, window_bounds = array<i64: 1, 3, 8, 128>}]} {
    %c0_i32 = arith.constant 0 : i32
    %0 = arith.cmpi eq, %arg1, %c0_i32 : i32
    %1 = arith.extui %0 : i1 to i32
    %c0_i32_0 = arith.constant 0 : i32
    %2 = arith.cmpi ne, %1, %c0_i32_0 : i32
    scf.if %2 {
      %cst_29 = arith.constant 0.000000e+00 : f32
      %36 = vector.broadcast %cst_29 : f32 to vector<1x3x8x128xf32>
      %c0_30 = arith.constant 0 : index
      %c0_31 = arith.constant 0 : index
      %c0_32 = arith.constant 0 : index
      %c0_33 = arith.constant 0 : index
      %37 = vector.load %arg4[%c0_30, %c0_31, %c0_32, %c0_33] : memref<1x3x8x128xf32, #tpu.memory_space<vmem>>, vector<1x3x8x128xf32>
      tpu.vector_store %arg4[%c0_30, %c0_31, %c0_32, %c0_33], %36 {strides = array<i32>} : memref<1x3x8x128xf32, #tpu.memory_space<vmem>>, vector<1x3x8x128xf32>,
    } else {
    }
    %cst = arith.constant 0.000000e+00 : f32
    %3 = vector.broadcast %cst : f32 to vector<8x128xf32>
    %c0 = arith.constant 0 : index
    %c0_1 = arith.constant 0 : index
    %4 = vector.load %arg2[%c0, %c0_1] : memref<16x128xf32, #tpu.memory_space<vmem>>, vector<16x128xf32>
    %c0_2 = arith.constant 0 : index
    %c0_3 = arith.constant 0 : index
    %5 = vector.load %arg3[%c0_2, %c0_3] : memref<16x128xf32, #tpu.memory_space<vmem>>, vector<16x128xf32>
    %6 = arith.mulf %4, %5 : vector<16x128xf32>
    %7 = vector.shape_cast %6 : vector<16x128xf32> to vector<2x8x128xf32>
    %cst_4 = arith.constant dense<0.000000e+00> : vector<8x128xf32>
    %8 = vector.multi_reduction <add>, %7, %cst_4 [0] : vector<2x8x128xf32> to vector<8x128xf32>
    %9 = arith.mulf %5, %5 : vector<16x128xf32>
    %10 = vector.shape_cast %9 : vector<16x128xf32> to vector<2x8x128xf32>
    %cst_5 = arith.constant dense<0.000000e+00> : vector<8x128xf32>
    %11 = vector.multi_reduction <add>, %10, %cst_5 [0] : vector<2x8x128xf32> to vector<8x128xf32>
    %12 = arith.mulf %4, %4 : vector<16x128xf32>
    %13 = vector.shape_cast %12 : vector<16x128xf32> to vector<2x8x128xf32>
    %cst_6 = arith.constant dense<0.000000e+00> : vector<8x128xf32>
    %14 = vector.multi_reduction <add>, %13, %cst_6 [0] : vector<2x8x128xf32> to vector<8x128xf32>
    %15 = arith.addf %3, %8 : vector<8x128xf32>
    %16 = arith.addf %3, %11 : vector<8x128xf32>
    %17 = arith.addf %3, %14 : vector<8x128xf32>
    %c0_7 = arith.constant 0 : index
    %c0_8 = arith.constant 0 : index
    %c0_9 = arith.constant 0 : index
    %c0_10 = arith.constant 0 : index
    %18 = vector.load %arg4[%c0_7, %c0_8, %c0_9, %c0_10] : memref<1x3x8x128xf32, #tpu.memory_space<vmem>>, vector<1x1x8x128xf32>
    %19 = vector.shape_cast %18 : vector<1x1x8x128xf32> to vector<8x128xf32>
    %20 = arith.addf %19, %15 : vector<8x128xf32>
    %c0_11 = arith.constant 0 : index
    %c0_12 = arith.constant 0 : index
    %c0_13 = arith.constant 0 : index
    %c0_14 = arith.constant 0 : index
    %21 = vector.load %arg4[%c0_11, %c0_12, %c0_13, %c0_14] : memref<1x3x8x128xf32, #tpu.memory_space<vmem>>, vector<1x1x8x128xf32>
    %22 = vector.shape_cast %21 : vector<1x1x8x128xf32> to vector<8x128xf32>
    %23 = vector.shape_cast %20 : vector<8x128xf32> to vector<1x1x8x128xf32>
    tpu.vector_store %arg4[%c0_11, %c0_12, %c0_13, %c0_14], %23 {strides = array<i32>} : memref<1x3x8x128xf32, #tpu.memory_space<vmem>>, vector<1x1x8x128xf32>,
    %c0_15 = arith.constant 0 : index
    %c1 = arith.constant 1 : index
    %c0_16 = arith.constant 0 : index
    %c0_17 = arith.constant 0 : index
    %24 = vector.load %arg4[%c0_15, %c1, %c0_16, %c0_17] : memref<1x3x8x128xf32, #tpu.memory_space<vmem>>, vector<1x1x8x128xf32>
    %25 = vector.shape_cast %24 : vector<1x1x8x128xf32> to vector<8x128xf32>
    %26 = arith.addf %25, %16 : vector<8x128xf32>
    %c0_18 = arith.constant 0 : index
    %c1_19 = arith.constant 1 : index
    %c0_20 = arith.constant 0 : index
    %c0_21 = arith.constant 0 : index
    %27 = vector.load %arg4[%c0_18, %c1_19, %c0_20, %c0_21] : memref<1x3x8x128xf32, #tpu.memory_space<vmem>>, vector<1x1x8x128xf32>
    %28 = vector.shape_cast %27 : vector<1x1x8x128xf32> to vector<8x128xf32>
    %29 = vector.shape_cast %26 : vector<8x128xf32> to vector<1x1x8x128xf32>
    tpu.vector_store %arg4[%c0_18, %c1_19, %c0_20, %c0_21], %29 {strides = array<i32>} : memref<1x3x8x128xf32, #tpu.memory_space<vmem>>, vector<1x1x8x128xf32>,
    %c0_22 = arith.constant 0 : index
    %c2 = arith.constant 2 : index
    %c0_23 = arith.constant 0 : index
    %c0_24 = arith.constant 0 : index
    %30 = vector.load %arg4[%c0_22, %c2, %c0_23, %c0_24] : memref<1x3x8x128xf32, #tpu.memory_space<vmem>>, vector<1x1x8x128xf32>
    %31 = vector.shape_cast %30 : vector<1x1x8x128xf32> to vector<8x128xf32>
    %32 = arith.addf %31, %17 : vector<8x128xf32>
    %c0_25 = arith.constant 0 : index
    %c2_26 = arith.constant 2 : index
    %c0_27 = arith.constant 0 : index
    %c0_28 = arith.constant 0 : index
    %33 = vector.load %arg4[%c0_25, %c2_26, %c0_27, %c0_28] : memref<1x3x8x128xf32, #tpu.memory_space<vmem>>, vector<1x1x8x128xf32>
    %34 = vector.shape_cast %33 : vector<1x1x8x128xf32> to vector<8x128xf32>
    %35 = vector.shape_cast %32 : vector<8x128xf32> to vector<1x1x8x128xf32>
    tpu.vector_store %arg4[%c0_25, %c2_26, %c0_27, %c0_28], %35 {strides = array<i32>} : memref<1x3x8x128xf32, #tpu.memory_space<vmem>>, vector<1x1x8x128xf32>,
    return
  }
  func.func @transform_0(%arg0: i32, %arg1: i32) -> (i32, i32) {
    %c1_i32 = arith.constant 1 : i32
    %0 = arith.muli %arg0, %c1_i32 : i32
    %1 = arith.addi %0, %arg1 : i32
    %c0_i32 = arith.constant 0 : i32
    %c0_i32_0 = arith.constant 0 : i32
    return %1, %c0_i32 : i32, i32
  }
  func.func @transform_1(%arg0: i32, %arg1: i32) -> (i32, i32) {
    %c1_i32 = arith.constant 1 : i32
    %0 = arith.muli %arg0, %c1_i32 : i32
    %1 = arith.addi %0, %arg1 : i32
    %c0_i32 = arith.constant 0 : i32
    %c0_i32_0 = arith.constant 0 : i32
    return %1, %c0_i32 : i32, i32
  }
  func.func @transform_2(%arg0: i32, %arg1: i32) -> (i32, i32, i32, i32) {
    %c0_i32 = arith.constant 0 : i32
    %c0_i32_0 = arith.constant 0 : i32
    %c0_i32_1 = arith.constant 0 : i32
    %c0_i32_2 = arith.constant 0 : i32
    return %arg0, %c0_i32, %c0_i32_0, %c0_i32_1 : i32, i32, i32, i32
  }
}

</mosaic_0001>

<llo_original>
// kernel: tpu_custom_call.1
$region0: #{tpu_custom_call.1}
  #allocation0 [shape = 'u32[]', space=smem, size = 0x4, offset = 0x4, fixed_abs, tag = 'smem constant byte address 0x4 - core index']
  #allocation1 [shape = 'u32[144,128]{1,0:T(1,128)}', space=vmem, size = 0x12000, scoped, tag = 'internal scratch']
  %s0 = inlined_call_operand.hbm [shape: f32[16,128], index: 0, kind: input, shape index: {}]
  %s1 = inlined_call_operand.hbm [shape: f32[16,128], index: 1, kind: input, shape index: {}]
  %s2 = inlined_call_operand.hbm [shape: f32[1,3,8,128], index: 2, kind: output, shape index: {}]
  %s3 = sld [smem:[#allocation0]]
  $region30: #{tpu_custom_call.1} parent=0
    _
  %s5 = ssub.s32 1, %s3
  %s6 = scalar_select 0, %s5, %s3
  $region1: #{tpu_custom_call.1} parent=0
    #allocation2 [shape = 'u8[8192]{0}', space=vmem, size = 0x2000, scoped, tag = 'input window, operand 0, single buffered']
    #allocation3 [shape = 's32[1]{0}', space=sflag, size = 0x4, scoped, tag = 'scoped memory for tpu_custom_call.1']
    #allocation4 [shape = 's32[1]{0}', space=sflag, size = 0x4, scoped, tag = 'scoped memory for tpu_custom_call.1']
    #allocation5 [shape = 'u8[8192]{0}', space=vmem, size = 0x2000, scoped, tag = 'input window, operand 1, single buffered']
    #allocation6 [shape = 's32[1]{0}', space=sflag, size = 0x4, scoped, tag = 'scoped memory for tpu_custom_call.1']
    #allocation7 [shape = 'u8[12288]{0}', space=vmem, size = 0x3000, scoped, tag = 'output window, operand 0, single buffered']
    %7 = vsyncpa [#allocation3], 0
    %8 = vsyncpa [#allocation6], 0
    %9 = vsyncpa [#allocation4], 0
    // Predicated region
    $region2: #{tpu_custom_call.1} parent=1 // pred_check
      _
    $region3: #{tpu_custom_call.1} parent=1 // pred_check_branch
      %11 = sbr.rel (0) target = $region5
    $region4: #{tpu_custom_call.1} parent=1 // pred_region
      %s12 = sadd.s32 0, 0
      %s13 = smul.u32 2, %s12
      %s15 = ssub.s32 256, 256
      %16 = vsyncadd [#allocation3], %s15
      %s17 = smul.addr %s13, 128
      %s18 = scalar_lea.hbm %s0, %s17
      %s19 = sshll.u32 [#allocation2], 4
      %s20 = int_to_ptr.vmem [resolvable:$true] %s19
      %25 = dma.hbm_to_vmem [thread:$0]  %s18, 256, %s20, [#allocation3], 128, 128, 8
    $region5: #{tpu_custom_call.1} parent=1 // pred_fallthru
      _
    // Predicated region
    $region6: #{tpu_custom_call.1} parent=1 // pred_check
      _
    $region7: #{tpu_custom_call.1} parent=1 // pred_check_branch
      %27 = sbr.rel (0) target = $region9
    $region8: #{tpu_custom_call.1} parent=1 // pred_region
      %s28 = sadd.s32 0, 0
      %s29 = smul.u32 2, %s28
      %s31 = ssub.s32 256, 256
      %32 = vsyncadd [#allocation6], %s31
      %s33 = smul.addr %s29, 128
      %s34 = scalar_lea.hbm %s1, %s33
      %s35 = sshll.u32 [#allocation5], 4
      %s36 = int_to_ptr.vmem [resolvable:$true] %s35
      %41 = dma.hbm_to_vmem [thread:$0]  %s34, 256, %s36, [#allocation6], 128, 128, 8
    $region9: #{tpu_custom_call.1} parent=1 // pred_fallthru
      _
    // Predicated region
    $region10: #{tpu_custom_call.1} parent=1 // pred_check
      _
    $region11: #{tpu_custom_call.1} parent=1 // pred_check_branch
      %43 = sbr.rel (0) target = $region13
    $region12: #{tpu_custom_call.1} parent=1 // pred_region
      %44 = dma.done [#allocation3], 256
    $region13: #{tpu_custom_call.1} parent=1 // pred_fallthru
      _
    // Predicated region
    $region14: #{tpu_custom_call.1} parent=1 // pred_check
      _
    $region15: #{tpu_custom_call.1} parent=1 // pred_check_branch
      %46 = sbr.rel (0) target = $region17
    $region16: #{tpu_custom_call.1} parent=1 // pred_region
      %47 = dma.done [#allocation6], 256
    $region17: #{tpu_custom_call.1} parent=1 // pred_fallthru
      _
    %s48 = sadd.s32 0, 0
    %s49 = smul.u32 2, %s48
    %s50 = sadd.s32 0, 0
    %s51 = smul.u32 2, %s50
    %p52 = scmp.eq.s32.totalorder 0, 0
    // Predicated region
    $region18: #{tpu_custom_call.1} parent=1 // pred_check
      %p53 = pneg %p52
    $region19: #{tpu_custom_call.1} parent=1 // pred_check_branch
      %55 = sbr.rel (%p53) target = $region21
    $region20: #{tpu_custom_call.1} parent=1 // pred_region
      %56 = vst [vmem:[#allocation7] sm:$0xff] 0.0
      %57 = vst [vmem:[#allocation7 + $0x8] sm:$0xff] 0.0
      %58 = vst [vmem:[#allocation7 + $0x10] sm:$0xff] 0.0
    $region21: #{tpu_custom_call.1} parent=1 // pred_fallthru
      _
    %v59 = vld [vmem:[#allocation2] sm:$0xff]
    %v60 = vld [vmem:[#allocation2 + $0x8] sm:$0xff]
    %v61 = vld [vmem:[#allocation5] sm:$0xff]
    %v62 = vld [vmem:[#allocation5 + $0x8] sm:$0xff]
    %v63 = vmul.f32 %v59, %v61
    %v64 = vmul.f32 %v60, %v62
    %v65 = vadd.f32 %v63, %v64
    %v66 = vmul.f32 %v61, %v61
    %v67 = vmul.f32 %v62, %v62
    %v68 = vadd.f32 %v66, %v67
    %v69 = vmul.f32 %v59, %v59
    %v70 = vmul.f32 %v60, %v60
    %v71 = vadd.f32 %v69, %v70
    %v72 = vadd.f32 %v65, 0.0
    %v73 = vadd.f32 %v68, 0.0
    %v74 = vadd.f32 %v71, 0.0
    %v75 = vld [vmem:[#allocation7] sm:$0xff]
    %v76 = vadd.f32 %v75, %v72
    %77 = vst [vmem:[#allocation7] sm:$0xff] %v76
    %s78 = scalar_lea.vmem [#allocation7], 8
    %v79 = vld [vmem:[%s78] sm:$0xff]
    %v80 = vadd.f32 %v79, %v73
    %81 = vst [vmem:[%s78] sm:$0xff] %v80
    %s82 = scalar_lea.vmem [#allocation7], 16
    %v83 = vld [vmem:[%s82] sm:$0xff]
    %v84 = vadd.f32 %v83, %v74
    %85 = vst [vmem:[%s82] sm:$0xff] %v84
    // Predicated region
    $region22: #{tpu_custom_call.1} parent=1 // pred_check
      _
    $region23: #{tpu_custom_call.1} parent=1 // pred_check_branch
      %87 = sbr.rel (0) target = $region25
    $region24: #{tpu_custom_call.1} parent=1 // pred_region
      %s89 = ssub.s32 384, 384
      %90 = vsyncadd [#allocation4], %s89
      %s91 = sshll.u32 [#allocation7], 4
      %s92 = int_to_ptr.vmem [resolvable:$true] %s91
      %97 = dma.vmem_to_hbm [thread:$0]  %s92, 384, %s2, [#allocation4], 128, 128, 8
    $region25: #{tpu_custom_call.1} parent=1 // pred_fallthru
      _
    // Predicated region
    $region26: #{tpu_custom_call.1} parent=1 // pred_check
      _
    $region27: #{tpu_custom_call.1} parent=1 // pred_check_branch
      %99 = sbr.rel (0) target = $region29
    $region28: #{tpu_custom_call.1} parent=1 // pred_region
      %100 = dma.done [#allocation4], 384
    $region29: #{tpu_custom_call.1} parent=1 // pred_fallthru
      _
    %101 = vsyncpa [#allocation3], 1
    %102 = vsyncpa [#allocation6], 1
    %103 = vsyncpa [#allocation4], 1

</llo_original>
